<compile_context>
chip_gen: v7x
topology: tpu7x:2x2x1
jax: 0.10.0
libtpu: 0.0.40
codegen_flags: <defaults>
</compile_context>

<pallas_src>
import functools
import math

import jax
import jax.numpy as jnp
from jax.experimental import pallas as pl
from jax.experimental.pallas import tpu as pltpu


def _round_up(n, m):
    return ((n + m - 1) // m) * m


def _cdiv(a, b):
    return -(-a // b)


def _device_kind():
    # Device-kind probe; conservative empty string if the query is unavailable.
    try:
        return jax.devices()[0].device_kind.lower()
    except Exception:
        return ""


def _mxu_multiple():
    """256 on 256x256-MXU chips (v6e / v7x), 128 on v5e / unknown."""
    kind = _device_kind()
    return 256 if ("v6" in kind or "v7" in kind) else 128


def _min_grid_steps():
    """v7x has 2 TensorCores per chip; keep >= 2 pipelined steps per core."""
    return 4 if "v7" in _device_kind() else 1


def _vmem_capacity_bytes():
    # Generation-aware physical VMEM (v5e/v6e: 128 MiB, v7x: 64 MiB per TC).
    try:
        return int(pltpu.get_tpu_info().vmem_capacity_bytes)
    except Exception:
        return 64 * 2**20  # conservative default (v7x per-TensorCore VMEM)


# ---------------------------------------------------------------------------
# One-time parameter preparation (hoisted out of the per-call forward path).
# ---------------------------------------------------------------------------
def prepare_mlp_params(w1, b1, w2, b2, w3, b3, *, compute_dtype=jnp.bfloat16):
    """Pad + cast weights/biases once; zero padding is exact for Linear+ReLU.

    w_k: (in_features, out_features) == PyTorch W.T; b_k: (1, out_features).
    Returns ((w1p, b1p, w2p, b2p, w3p, b3p), (d_in, d_out)).
    """
    mxu = _mxu_multiple()

    def pad_dim(d):
        # Lane-dense (128) always; fill the 256-wide MXU only when the real
        # dim is already >= 256 (padding tiny dims to 256 just wastes VMEM).
        return _round_up(d, 256) if (mxu == 256 and d >= 256) else _round_up(d, 128)

    d_in, d_h1 = w1.shape
    d_h2 = w2.shape[1]
    d_out = w3.shape[1]
    d_in_p, d_h1_p, d_h2_p, d_out_p = map(pad_dim, (d_in, d_h1, d_h2, d_out))

    cd = jnp.dtype(compute_dtype)
    w1p = jnp.pad(w1, ((0, d_in_p - d_in), (0, d_h1_p - d_h1))).astype(cd)
    w2p = jnp.pad(w2, ((0, d_h1_p - d_h1), (0, d_h2_p - d_h2))).astype(cd)
    w3p = jnp.pad(w3, ((0, d_h2_p - d_h2), (0, d_out_p - d_out))).astype(cd)
    b1p = jnp.pad(b1, ((0, 0), (0, d_h1_p - d_h1))).astype(jnp.float32)
    b2p = jnp.pad(b2, ((0, 0), (0, d_h2_p - d_h2))).astype(jnp.float32)
    b3p = jnp.pad(b3, ((0, 0), (0, d_out_p - d_out))).astype(jnp.float32)
    return (w1p, b1p, w2p, b2p, w3p, b3p), (d_in, d_out)


# ---------------------------------------------------------------------------
# Kernel
# ---------------------------------------------------------------------------
def _mlp_kernel(x_ref, w1_ref, b1_ref, w2_ref, b2_ref, w3_ref, b3_ref, o_ref):
    cd = w1_ref.dtype  # MXU input dtype (bf16 by default); f32 accumulation.
    x = x_ref[...].astype(cd)  # in-kernel cast: x streams from HBM as f32
    # hidden layer 1: Linear (MXU) + bias + ReLU (VPU, f32)
    h = jnp.dot(x, w1_ref[...], preferred_element_type=jnp.float32)
    h = jnp.maximum(h + b1_ref[...], 0.0)
    # hidden layer 2: Linear + bias + ReLU
    h = jnp.dot(h.astype(cd), w2_ref[...], preferred_element_type=jnp.float32)
    h = jnp.maximum(h + b2_ref[...], 0.0)
    # output layer: Linear + bias (no activation)
    o = jnp.dot(h.astype(cd), w3_ref[...], preferred_element_type=jnp.float32)
    o_ref[...] = (o + b3_ref[...]).astype(o_ref.dtype)


@functools.partial(
    jax.jit,
    static_argnames=("block_batch", "d_out", "min_grid_steps", "out_dtype"))
def _mlp_forward_impl(x, w1p, b1p, w2p, b2p, w3p, b3p, *, block_batch, d_out,
                      min_grid_steps, out_dtype):
    B, d_in = x.shape
    d_in_p, d_h1_p = w1p.shape
    d_h2_p = w2p.shape[1]
    d_out_p = w3p.shape[1]
    cd_bytes = jnp.dtype(w1p.dtype).itemsize
    out_bytes = jnp.dtype(out_dtype).itemsize

    # Batch tile: multiple of 16, default 512 rows (single-TC v5e/v6e prefer
    # few, fat steps); on v7x keep >= 4 steps so both TCs pipeline x/out DMA.
    bb = min(_round_up(block_batch, 16), _round_up(B, 16))
    if min_grid_steps > 1 and B > 16:
        bb = min(bb, max(16, _round_up(_cdiv(B, min_grid_steps), 16)))
    Bp = _round_up(B, bb)
    grid = (Bp // bb,)

    # Pad x (f32, no cast) — the cast happens per-tile inside the kernel.
    xp = jnp.pad(x, ((0, Bp - B), (0, d_in_p - d_in)))

    def resident(shape):
        # Loop-invariant block (index map constant): DMA'd once by pipeliner.
        return pl.BlockSpec(shape, lambda i: (0,) * len(shape))

    # VMEM budget (generation-aware cap).
    weight_elems = d_in_p * d_h1_p + d_h1_p * d_h2_p + d_h2_p * d_out_p
    bias_elems = d_h1_p + d_h2_p + d_out_p
    resident_bytes = 2 * (weight_elems * cd_bytes + bias_elems * 4)  # 2 bufs
    streamed_bytes = 2 * bb * (d_in_p * 4 + d_out_p * out_bytes)
    temp_bytes = (bb * (d_h1_p + d_h2_p + d_out_p) * 4
                  + bb * max(d_in_p, d_h1_p, d_h2_p) * cd_bytes)
    needed = resident_bytes + streamed_bytes + temp_bytes
    vmem_cap = int(0.85 * _vmem_capacity_bytes())
    vmem_limit = int(min(vmem_cap, max(2 * needed, 32 * 2**20)))
    # TODO(synk): when `needed` approaches vmem_cap (wide layers; hits first on
    # v7x's 64 MiB VMEM), add an out-feature grid axis tiling w1/w3 in 256-wide
    # blocks with a pl.when-guarded accumulator instead of all-resident weights.

    cost = pl.CostEstimate(
        flops=int(2 * Bp * weight_elems),
        transcendentals=0,
        bytes_accessed=int(Bp * d_in_p * 4 + weight_elems * cd_bytes
                           + bias_elems * 4 + Bp * d_out_p * out_bytes),
    )

    out_p = pl.pallas_call(
        _mlp_kernel,
        out_shape=jax.ShapeDtypeStruct((Bp, d_out_p), out_dtype),
        grid=grid,
        in_specs=[
            pl.BlockSpec((bb, d_in_p), lambda i: (i, 0)),   # x tile (f32)
            resident((d_in_p, d_h1_p)),                     # w1
            resident((1, d_h1_p)),                          # b1
            resident((d_h1_p, d_h2_p)),                     # w2
            resident((1, d_h2_p)),                          # b2
            resident((d_h2_p, d_out_p)),                    # w3
            resident((1, d_out_p)),                         # b3
        ],
        out_specs=pl.BlockSpec((bb, d_out_p), lambda i: (i, 0)),
        compiler_params=pltpu.CompilerParams(
            dimension_semantics=("parallel",),
            vmem_limit_bytes=vmem_limit),
        cost_estimate=cost,
    )(xp, w1p, b1p, w2p, b2p, w3p, b3p)

    return out_p[:B, :d_out]


def mlp_forward(x, prepared, *, block_batch=512, out_dtype=jnp.float32):
    """Fused MLP forward. x: (B, D_in) f32; `prepared` from prepare_mlp_params."""
    (w1p, b1p, w2p, b2p, w3p, b3p), (d_in, d_out) = prepared
    assert x.shape[1] == d_in, "input feature dim mismatch with prepared params"
    return _mlp_forward_impl(x, w1p, b1p, w2p, b2p, w3p, b3p,
                             block_batch=int(block_batch), d_out=int(d_out),
                             min_grid_steps=_min_grid_steps(),
                             out_dtype=out_dtype)


# ---------------------------------------------------------------------------
# Reference + demo
# ---------------------------------------------------------------------------
def init_params(key, input_dim, layers, output_dim):
    """Deterministic parameter init (PyTorch-Linear-style uniform bounds)."""
    dims = [input_dim] + list(layers) + [output_dim]
    params = []
    for fan_in, fan_out in zip(dims[:-1], dims[1:]):
        key, kw, kb = jax.random.split(key, 3)
        bound = 1.0 / math.sqrt(fan_in)
        w = jax.random.uniform(kw, (fan_in, fan_out), jnp.float32,
                               minval=-bound, maxval=bound)
        b = jax.random.uniform(kb, (1, fan_out), jnp.float32,
                               minval=-bound, maxval=bound)
        params.extend([w, b])
    return params


def mlp_reference(x, w1, b1, w2, b2, w3, b3):
    hi = jax.lax.Precision.HIGHEST
    h = jnp.maximum(jnp.dot(x, w1, precision=hi) + b1, 0.0)
    h = jnp.maximum(jnp.dot(h, w2, precision=hi) + b2, 0.0)
    return jnp.dot(h, w3, precision=hi) + b3


if __name__ == "__main__":
    # MLP-consistent small demo shapes; batch deliberately not a multiple of
    # the tile so batch padding is exercised.
    batch, input_dim, layers, output_dim = 300, 32, (64, 64), 16

    key = jax.random.PRNGKey(0)
    key, kx = jax.random.split(key)
    x = jax.random.normal(kx, (batch, input_dim), jnp.float32)
    w1, b1, w2, b2, w3, b3 = init_params(key, input_dim, layers, output_dim)

    ref = mlp_reference(x, w1, b1, w2, b2, w3, b3)

    # One-time pad+cast of the weights (hoisted out of the per-call path).
    prep_f32 = prepare_mlp_params(w1, b1, w2, b2, w3, b3,
                                  compute_dtype=jnp.float32)
    prep_bf16 = prepare_mlp_params(w1, b1, w2, b2, w3, b3,
                                   compute_dtype=jnp.bfloat16)

    # 1) f32 compute path, default batch tile (single / few grid steps).
    out_f32 = jax.block_until_ready(mlp_forward(x, prep_f32))
    assert out_f32.shape == (batch, output_dim)
    assert jnp.allclose(out_f32, ref, atol=1e-2, rtol=1e-2), \
        "f32 kernel mismatch vs reference"

    # 2) Default bf16 MXU path with a multi-step grid (exercises batch padding
    #    and tiling); f32 accumulation keeps the error within bf16 tolerance.
    out = jax.block_until_ready(mlp_forward(x, prep_bf16, block_batch=128))
    assert out.shape == (batch, output_dim)
    assert jnp.allclose(out, ref, atol=5e-2, rtol=5e-2), \
        "bf16 kernel mismatch vs reference"

    print("KERNEL_OK")
</pallas_src>

<mosaic_0001>
module attributes {stable_mosaic.version = 11 : i64} {
  func.func @_mlp_kernel(%arg0: i32, %arg1: memref<304x128xf32, #tpu.memory_space<vmem>>, %arg2: memref<128x128xf32, #tpu.memory_space<vmem>>, %arg3: memref<1x128xf32, #tpu.memory_space<vmem>>, %arg4: memref<128x128xf32, #tpu.memory_space<vmem>>, %arg5: memref<1x128xf32, #tpu.memory_space<vmem>>, %arg6: memref<128x128xf32, #tpu.memory_space<vmem>>, %arg7: memref<1x128xf32, #tpu.memory_space<vmem>>, %arg8: memref<304x128xf32, #tpu.memory_space<vmem>>) attributes {dimension_semantics = [#tpu.dimension_semantics<parallel>], iteration_bounds = array<i64: 1>, scalar_prefetch = 0 : i64, scratch_operands = 0 : i64, tpu.core_type = #tpu.core_type<tc>, window_params = [{transform_indices = @transform_0, window_bounds = array<i64: 304, 128>}, {pipeline_mode = #tpu.pipeline_mode<synchronous>, transform_indices = @transform_1, window_bounds = array<i64: 128, 128>}, {pipeline_mode = #tpu.pipeline_mode<synchronous>, transform_indices = @transform_2, window_bounds = array<i64: 1, 128>}, {pipeline_mode = #tpu.pipeline_mode<synchronous>, transform_indices = @transform_3, window_bounds = array<i64: 128, 128>}, {pipeline_mode = #tpu.pipeline_mode<synchronous>, transform_indices = @transform_4, window_bounds = array<i64: 1, 128>}, {pipeline_mode = #tpu.pipeline_mode<synchronous>, transform_indices = @transform_5, window_bounds = array<i64: 128, 128>}, {pipeline_mode = #tpu.pipeline_mode<synchronous>, transform_indices = @transform_6, window_bounds = array<i64: 1, 128>}, {transform_indices = @transform_7, window_bounds = array<i64: 304, 128>}]} {
    %c0 = arith.constant 0 : index
    %c0_0 = arith.constant 0 : index
    %0 = vector.load %arg1[%c0, %c0_0] : memref<304x128xf32, #tpu.memory_space<vmem>>, vector<304x128xf32>
    %c0_1 = arith.constant 0 : index
    %c0_2 = arith.constant 0 : index
    %1 = vector.load %arg2[%c0_1, %c0_2] : memref<128x128xf32, #tpu.memory_space<vmem>>, vector<128x128xf32>
    %cst = arith.constant dense<0.000000e+00> : vector<304x128xf32>
    %2 = tpu.matmul %0, %1, %cst {dimension_numbers = #tpu.dot_dimension_numbers<[1], [0], [0], [1], [0, 0, 1, 1], [], []>} : vector<304x128xf32>, vector<128x128xf32>, vector<304x128xf32> -> vector<304x128xf32>
    %c0_3 = arith.constant 0 : index
    %c0_4 = arith.constant 0 : index
    %3 = vector.load %arg3[%c0_3, %c0_4] : memref<1x128xf32, #tpu.memory_space<vmem>>, vector<1x128xf32>
    %4 = vector.broadcast %3 : vector<1x128xf32> to vector<304x128xf32>
    %5 = arith.addf %2, %4 : vector<304x128xf32>
    %cst_5 = arith.constant 0.000000e+00 : f32
    %6 = vector.broadcast %cst_5 : f32 to vector<304x128xf32>
    %7 = arith.maximumf %5, %6 : vector<304x128xf32>
    %c0_6 = arith.constant 0 : index
    %c0_7 = arith.constant 0 : index
    %8 = vector.load %arg4[%c0_6, %c0_7] : memref<128x128xf32, #tpu.memory_space<vmem>>, vector<128x128xf32>
    %cst_8 = arith.constant dense<0.000000e+00> : vector<304x128xf32>
    %9 = tpu.matmul %7, %8, %cst_8 {dimension_numbers = #tpu.dot_dimension_numbers<[1], [0], [0], [1], [0, 0, 1, 1], [], []>} : vector<304x128xf32>, vector<128x128xf32>, vector<304x128xf32> -> vector<304x128xf32>
    %c0_9 = arith.constant 0 : index
    %c0_10 = arith.constant 0 : index
    %10 = vector.load %arg5[%c0_9, %c0_10] : memref<1x128xf32, #tpu.memory_space<vmem>>, vector<1x128xf32>
    %11 = vector.broadcast %10 : vector<1x128xf32> to vector<304x128xf32>
    %12 = arith.addf %9, %11 : vector<304x128xf32>
    %cst_11 = arith.constant 0.000000e+00 : f32
    %13 = vector.broadcast %cst_11 : f32 to vector<304x128xf32>
    %14 = arith.maximumf %12, %13 : vector<304x128xf32>
    %c0_12 = arith.constant 0 : index
    %c0_13 = arith.constant 0 : index
    %15 = vector.load %arg6[%c0_12, %c0_13] : memref<128x128xf32, #tpu.memory_space<vmem>>, vector<128x128xf32>
    %cst_14 = arith.constant dense<0.000000e+00> : vector<304x128xf32>
    %16 = tpu.matmul %14, %15, %cst_14 {dimension_numbers = #tpu.dot_dimension_numbers<[1], [0], [0], [1], [0, 0, 1, 1], [], []>} : vector<304x128xf32>, vector<128x128xf32>, vector<304x128xf32> -> vector<304x128xf32>
    %c0_15 = arith.constant 0 : index
    %c0_16 = arith.constant 0 : index
    %17 = vector.load %arg7[%c0_15, %c0_16] : memref<1x128xf32, #tpu.memory_space<vmem>>, vector<1x128xf32>
    %18 = vector.broadcast %17 : vector<1x128xf32> to vector<304x128xf32>
    %19 = arith.addf %16, %18 : vector<304x128xf32>
    %c0_17 = arith.constant 0 : index
    %c0_18 = arith.constant 0 : index
    %20 = vector.load %arg8[%c0_17, %c0_18] : memref<304x128xf32, #tpu.memory_space<vmem>>, vector<304x128xf32>
    tpu.vector_store %arg8[%c0_17, %c0_18], %19 {strides = array<i32>} : memref<304x128xf32, #tpu.memory_space<vmem>>, vector<304x128xf32>,
    return
  }
  func.func @transform_0(%arg0: i32) -> (i32, i32) {
    %c0_i32 = arith.constant 0 : i32
    %c0_i32_0 = arith.constant 0 : i32
    return %arg0, %c0_i32 : i32, i32
  }
  func.func @transform_1(%arg0: i32) -> (i32, i32) {
    %c0_i32 = arith.constant 0 : i32
    %c0_i32_0 = arith.constant 0 : i32
    %c0_i32_1 = arith.constant 0 : i32
    return %c0_i32, %c0_i32_0 : i32, i32
  }
  func.func @transform_2(%arg0: i32) -> (i32, i32) {
    %c0_i32 = arith.constant 0 : i32
    %c0_i32_0 = arith.constant 0 : i32
    %c0_i32_1 = arith.constant 0 : i32
    return %c0_i32, %c0_i32_0 : i32, i32
  }
  func.func @transform_3(%arg0: i32) -> (i32, i32) {
    %c0_i32 = arith.constant 0 : i32
    %c0_i32_0 = arith.constant 0 : i32
    %c0_i32_1 = arith.constant 0 : i32
    return %c0_i32, %c0_i32_0 : i32, i32
  }
  func.func @transform_4(%arg0: i32) -> (i32, i32) {
    %c0_i32 = arith.constant 0 : i32
    %c0_i32_0 = arith.constant 0 : i32
    %c0_i32_1 = arith.constant 0 : i32
    return %c0_i32, %c0_i32_0 : i32, i32
  }
  func.func @transform_5(%arg0: i32) -> (i32, i32) {
    %c0_i32 = arith.constant 0 : i32
    %c0_i32_0 = arith.constant 0 : i32
    %c0_i32_1 = arith.constant 0 : i32
    return %c0_i32, %c0_i32_0 : i32, i32
  }
  func.func @transform_6(%arg0: i32) -> (i32, i32) {
    %c0_i32 = arith.constant 0 : i32
    %c0_i32_0 = arith.constant 0 : i32
    %c0_i32_1 = arith.constant 0 : i32
    return %c0_i32, %c0_i32_0 : i32, i32
  }
  func.func @transform_7(%arg0: i32) -> (i32, i32) {
    %c0_i32 = arith.constant 0 : i32
    %c0_i32_0 = arith.constant 0 : i32
    return %arg0, %c0_i32 : i32, i32
  }
}

</mosaic_0001>

<llo_original>
// kernel: _mlp_forward_impl.1
$region0: #{_mlp_forward_impl.1}
  #allocation0 [shape = 'u32[]', space=smem, size = 0x4, offset = 0x4, fixed_abs, tag = 'smem constant byte address 0x4 - core index']
  #allocation1 [shape = 'u32[144,128]{1,0:T(1,128)}', space=vmem, size = 0x12000, scoped, tag = 'internal scratch']
  %s0 = inlined_call_operand.vmem [shape: f32[304,128], index: 0, kind: input, shape index: {}]
  %s1 = inlined_call_operand.vmem [shape: f32[128,128], index: 1, kind: input, shape index: {}]
  %s2 = inlined_call_operand.vmem [shape: f32[1,128], index: 2, kind: input, shape index: {}]
  %s3 = inlined_call_operand.vmem [shape: f32[128,128], index: 3, kind: input, shape index: {}]
  %s4 = inlined_call_operand.vmem [shape: f32[1,128], index: 4, kind: input, shape index: {}]
  %s5 = inlined_call_operand.vmem [shape: f32[128,128], index: 5, kind: input, shape index: {}]
  %s6 = inlined_call_operand.vmem [shape: f32[1,128], index: 6, kind: input, shape index: {}]
  %s7 = inlined_call_operand.vmem [shape: f32[304,128], index: 7, kind: output, shape index: {}]
  %s8 = sld [smem:[#allocation0]]
  $region38: #{_mlp_forward_impl.1} parent=0
    _
  %s10 = ssub.s32 1, %s8
  %s11 = scalar_select 0, %s10, %s8
  // Predicated region
  $region2: #{_mlp_forward_impl.1} parent=0 // pred_check
    _
  $region3: #{_mlp_forward_impl.1} parent=0 // pred_check_branch
    %13 = sbr.rel (0) target = $region5
  $region4: #{_mlp_forward_impl.1} parent=0 // pred_region
    _
  $region5: #{_mlp_forward_impl.1} parent=0 // pred_fallthru
    _
  // Predicated region
  $region6: #{_mlp_forward_impl.1} parent=0 // pred_check
    _
  $region7: #{_mlp_forward_impl.1} parent=0 // pred_check_branch
    %15 = sbr.rel (0) target = $region9
  $region8: #{_mlp_forward_impl.1} parent=0 // pred_region
    _
  $region9: #{_mlp_forward_impl.1} parent=0 // pred_fallthru
    _
  // Predicated region
  $region10: #{_mlp_forward_impl.1} parent=0 // pred_check
    _
  $region11: #{_mlp_forward_impl.1} parent=0 // pred_check_branch
    %17 = sbr.rel (0) target = $region13
  $region12: #{_mlp_forward_impl.1} parent=0 // pred_region
    _
  $region13: #{_mlp_forward_impl.1} parent=0 // pred_fallthru
    _
  // Predicated region
  $region14: #{_mlp_forward_impl.1} parent=0 // pred_check
    _
  $region15: #{_mlp_forward_impl.1} parent=0 // pred_check_branch
    %19 = sbr.rel (0) target = $region17
  $region16: #{_mlp_forward_impl.1} parent=0 // pred_region
    _
  $region17: #{_mlp_forward_impl.1} parent=0 // pred_fallthru
    _
  // Predicated region
  $region18: #{_mlp_forward_impl.1} parent=0 // pred_check
    _
  $region19: #{_mlp_forward_impl.1} parent=0 // pred_check_branch
    %21 = sbr.rel (0) target = $region21
  $region20: #{_mlp_forward_impl.1} parent=0 // pred_region
    _
  $region21: #{_mlp_forward_impl.1} parent=0 // pred_fallthru
    _
  // Predicated region
  $region22: #{_mlp_forward_impl.1} parent=0 // pred_check
    _
  $region23: #{_mlp_forward_impl.1} parent=0 // pred_check_branch
    %23 = sbr.rel (0) target = $region25
  $region24: #{_mlp_forward_impl.1} parent=0 // pred_region
    _
  $region25: #{_mlp_forward_impl.1} parent=0 // pred_fallthru
    _
  // Predicated region
  $region26: #{_mlp_forward_impl.1} parent=0 // pred_check
    _
  $region27: #{_mlp_forward_impl.1} parent=0 // pred_check_branch
    %25 = sbr.rel (0) target = $region29
  $region28: #{_mlp_forward_impl.1} parent=0 // pred_region
    _
  $region29: #{_mlp_forward_impl.1} parent=0 // pred_fallthru
    _
  %v26 = vld [vmem:[%s0] sm:$0xff]
  %v27 = vld [vmem:[%s0 + $0x8] sm:$0xff]
  %v28 = vld [vmem:[%s0 + $0x10] sm:$0xff]
  %v29 = vld [vmem:[%s0 + $0x18] sm:$0xff]
  %v30 = vld [vmem:[%s0 + $0x20] sm:$0xff]
  %v31 = vld [vmem:[%s0 + $0x28] sm:$0xff]
  %v32 = vld [vmem:[%s0 + $0x30] sm:$0xff]
  %v33 = vld [vmem:[%s0 + $0x38] sm:$0xff]
  %v34 = vld [vmem:[%s0 + $0x40] sm:$0xff]
  %v35 = vld [vmem:[%s0 + $0x48] sm:$0xff]
  %v36 = vld [vmem:[%s0 + $0x50] sm:$0xff]
  %v37 = vld [vmem:[%s0 + $0x58] sm:$0xff]
  %v38 = vld [vmem:[%s0 + $0x60] sm:$0xff]
  %v39 = vld [vmem:[%s0 + $0x68] sm:$0xff]
  %v40 = vld [vmem:[%s0 + $0x70] sm:$0xff]
  %v41 = vld [vmem:[%s0 + $0x78] sm:$0xff]
  %v42 = vld [vmem:[%s0 + $0x80] sm:$0xff]
  %v43 = vld [vmem:[%s0 + $0x88] sm:$0xff]
  %v44 = vld [vmem:[%s0 + $0x90] sm:$0xff]
  %v45 = vld [vmem:[%s0 + $0x98] sm:$0xff]
  %v46 = vld [vmem:[%s0 + $0xa0] sm:$0xff]
  %v47 = vld [vmem:[%s0 + $0xa8] sm:$0xff]
  %v48 = vld [vmem:[%s0 + $0xb0] sm:$0xff]
  %v49 = vld [vmem:[%s0 + $0xb8] sm:$0xff]
  %v50 = vld [vmem:[%s0 + $0xc0] sm:$0xff]
  %v51 = vld [vmem:[%s0 + $0xc8] sm:$0xff]
  %v52 = vld [vmem:[%s0 + $0xd0] sm:$0xff]
  %v53 = vld [vmem:[%s0 + $0xd8] sm:$0xff]
  %v54 = vld [vmem:[%s0 + $0xe0] sm:$0xff]
  %v55 = vld [vmem:[%s0 + $0xe8] sm:$0xff]
  %v56 = vld [vmem:[%s0 + $0xf0] sm:$0xff]
  %v57 = vld [vmem:[%s0 + $0xf8] sm:$0xff]
  %v58 = vld [vmem:[%s0 + $0x100] sm:$0xff]
  %v59 = vld [vmem:[%s0 + $0x108] sm:$0xff]
  %v60 = vld [vmem:[%s0 + $0x110] sm:$0xff]
  %v61 = vld [vmem:[%s0 + $0x118] sm:$0xff]
  %v62 = vld [vmem:[%s0 + $0x120] sm:$0xff]
  %v63 = vld [vmem:[%s0 + $0x128] sm:$0xff]
  %v64 = vld [vmem:[%s1] sm:$0xff]
  %v65 = vld [vmem:[%s1 + $0x8] sm:$0xff]
  %v66 = vld [vmem:[%s1 + $0x10] sm:$0xff]
  %v67 = vld [vmem:[%s1 + $0x18] sm:$0xff]
  %v68 = vld [vmem:[%s1 + $0x20] sm:$0xff]
  %v69 = vld [vmem:[%s1 + $0x28] sm:$0xff]
  %v70 = vld [vmem:[%s1 + $0x30] sm:$0xff]
  %v71 = vld [vmem:[%s1 + $0x38] sm:$0xff]
  %v72 = vld [vmem:[%s1 + $0x40] sm:$0xff]
  %v73 = vld [vmem:[%s1 + $0x48] sm:$0xff]
  %v74 = vld [vmem:[%s1 + $0x50] sm:$0xff]
  %v75 = vld [vmem:[%s1 + $0x58] sm:$0xff]
  %v76 = vld [vmem:[%s1 + $0x60] sm:$0xff]
  %v77 = vld [vmem:[%s1 + $0x68] sm:$0xff]
  %v78 = vld [vmem:[%s1 + $0x70] sm:$0xff]
  %v79 = vld [vmem:[%s1 + $0x78] sm:$0xff]
  %v80 = vld [vmem:[%s2] sm:$0x1]
  %v82 = vlaneseq
  %v83 = vshrl.u32 %v82, 7
  %v84 = vsub.s32 0, %v83
  %v85 = vrot.slane %v80, %v84
  %87 = vmatprep.subr.mxu0 0.0
  %88 = vmatpush1.msra.mxu0 %v64
  %89 = vmatprep.subr.mxu0 0.0
  %90 = vmatpush1.msra.mxu0 %v65
  %91 = vmatprep.subr.mxu0 0.0
  %92 = vmatpush1.msra.mxu0 %v66
  %93 = vmatprep.subr.mxu0 0.0
  %94 = vmatpush1.msra.mxu0 %v67
  %95 = vmatprep.subr.mxu0 0.0
  %96 = vmatpush1.msra.mxu0 %v68
  %97 = vmatprep.subr.mxu0 0.0
  %98 = vmatpush1.msra.mxu0 %v69
  %99 = vmatprep.subr.mxu0 0.0
  %100 = vmatpush1.msra.mxu0 %v70
  %101 = vmatprep.subr.mxu0 0.0
  %102 = vmatpush1.msra.mxu0 %v71
  %103 = vmatprep.subr.mxu0 0.0
  %104 = vmatpush1.msra.mxu0 %v72
  %105 = vmatprep.subr.mxu0 0.0
  %106 = vmatpush1.msra.mxu0 %v73
  %107 = vmatprep.subr.mxu0 0.0
  %108 = vmatpush1.msra.mxu0 %v74
  %109 = vmatprep.subr.mxu0 0.0
  %110 = vmatpush1.msra.mxu0 %v75
  %111 = vmatprep.subr.mxu0 0.0
  %112 = vmatpush1.msra.mxu0 %v76
  %113 = vmatprep.subr.mxu0 0.0
  %114 = vmatpush1.msra.mxu0 %v77
  %115 = vmatprep.subr.mxu0 0.0
  %116 = vmatpush1.msra.mxu0 %v78
  %117 = vmatprep.subr.mxu0 0.0
  %118 = vmatpush1.msra.mxu0 %v79
  %119 = vmatprep.subr.mxu0 0.0
  %120 = vmatpush1.msra.mxu0 0.0
  %121 = vmatprep.subr.mxu0 0.0
  %122 = vmatpush1.msra.mxu0 0.0
  %123 = vmatprep.subr.mxu0 0.0
  %124 = vmatpush1.msra.mxu0 0.0
  %125 = vmatprep.subr.mxu0 0.0
  %126 = vmatpush1.msra.mxu0 0.0
  %127 = vmatprep.subr.mxu0 0.0
  %128 = vmatpush1.msra.mxu0 0.0
  %129 = vmatprep.subr.mxu0 0.0
  %130 = vmatpush1.msra.mxu0 0.0
  %131 = vmatprep.subr.mxu0 0.0
  %132 = vmatpush1.msra.mxu0 0.0
  %133 = vmatprep.subr.mxu0 0.0
  %134 = vmatpush1.msra.mxu0 0.0
  %135 = vmatprep.subr.mxu0 0.0
  %136 = vmatpush1.msra.mxu0 0.0
  %137 = vmatprep.subr.mxu0 0.0
  %138 = vmatpush1.msra.mxu0 0.0
  %139 = vmatprep.subr.mxu0 0.0
  %140 = vmatpush1.msra.mxu0 0.0
  %141 = vmatprep.subr.mxu0 0.0
  %142 = vmatpush1.msra.mxu0 0.0
  %143 = vmatprep.subr.mxu0 0.0
  %144 = vmatpush1.msra.mxu0 0.0
  %145 = vmatprep.subr.mxu0 0.0
  %146 = vmatpush1.msra.mxu0 0.0
  %147 = vmatprep.subr.mxu0 0.0
  %148 = vmatpush1.msra.mxu0 0.0
  %149 = vmatprep.subr.mxu0 0.0
  %150 = vmatpush1.msra.mxu0 0.0
  %151 = vmatprep.mubr.f32.mxu0 0.0
  %152 = vmatmul.mubr.f32.gmra.mrb[0].mxu0 %v26
  %v153 = vpop.f32.mrb[0].mxu0
  %v154 = vadd.f32 %v85, %v153
  %v155 = vpop.f32.mrb[0].mxu0
  %156 = vmatprep.mubr.f32.mxu0 0.0
  %157 = vmatmul.mubr.f32.gmra.mrb[0].mxu0 %v27
  %v158 = vpop.f32.mrb[0].mxu0
  %v159 = vadd.f32 %v85, %v158
  %v160 = vpop.f32.mrb[0].mxu0
  %161 = vmatprep.mubr.f32.mxu0 0.0
  %162 = vmatmul.mubr.f32.gmra.mrb[0].mxu0 %v28
  %v163 = vpop.f32.mrb[0].mxu0
  %v164 = vadd.f32 %v85, %v163
  %v165 = vpop.f32.mrb[0].mxu0
  %166 = vmatprep.mubr.f32.mxu0 0.0
  %167 = vmatmul.mubr.f32.gmra.mrb[0].mxu0 %v29
  %v168 = vpop.f32.mrb[0].mxu0
  %v169 = vadd.f32 %v85, %v168
  %v170 = vpop.f32.mrb[0].mxu0
  %171 = vmatprep.mubr.f32.mxu0 0.0
  %172 = vmatmul.mubr.f32.gmra.mrb[0].mxu0 %v30
  %v173 = vpop.f32.mrb[0].mxu0
  %v174 = vadd.f32 %v85, %v173
  %v175 = vpop.f32.mrb[0].mxu0
  %176 = vmatprep.mubr.f32.mxu0 0.0
  %177 = vmatmul.mubr.f32.gmra.mrb[0].mxu0 %v31
  %v178 = vpop.f32.mrb[0].mxu0
  %v179 = vadd.f32 %v85, %v178
  %v180 = vpop.f32.mrb[0].mxu0
  %181 = vmatprep.mubr.f32.mxu0 0.0
  %182 = vmatmul.mubr.f32.gmra.mrb[0].mxu0 %v32
  %v183 = vpop.f32.mrb[0].mxu0
  %v184 = vadd.f32 %v85, %v183
  %v185 = vpop.f32.mrb[0].mxu0
  %186 = vmatprep.mubr.f32.mxu0 0.0
  %187 = vmatmul.mubr.f32.gmra.mrb[0].mxu0 %v33
  %v188 = vpop.f32.mrb[0].mxu0
  %v189 = vadd.f32 %v85, %v188
  %v190 = vpop.f32.mrb[0].mxu0
  %191 = vmatprep.mubr.f32.mxu0 0.0
  %192 = vmatmul.mubr.f32.gmra.mrb[0].mxu0 %v34
  %v193 = vpop.f32.mrb[0].mxu0
  %v194 = vadd.f32 %v85, %v193
  %v195 = vpop.f32.mrb[0].mxu0
  %196 = vmatprep.mubr.f32.mxu0 0.0
  %197 = vmatmul.mubr.f32.gmra.mrb[0].mxu0 %v35
  %v198 = vpop.f32.mrb[0].mxu0
  %v199 = vadd.f32 %v85, %v198
  %v200 = vpop.f32.mrb[0].mxu0
  %201 = vmatprep.mubr.f32.mxu0 0.0
  %202 = vmatmul.mubr.f32.gmra.mrb[0].mxu0 %v36
  %v203 = vpop.f32.mrb[0].mxu0
  %v204 = vadd.f32 %v85, %v203
  %v205 = vpop.f32.mrb[0].mxu0
  %206 = vmatprep.mubr.f32.mxu0 0.0
  %207 = vmatmul.mubr.f32.gmra.mrb[0].mxu0 %v37
  %v208 = vpop.f32.mrb[0].mxu0
  %v209 = vadd.f32 %v85, %v208
  %v210 = vpop.f32.mrb[0].mxu0
  %211 = vmatprep.mubr.f32.mxu0 0.0
  %212 = vmatmul.mubr.f32.gmra.mrb[0].mxu0 %v38
  %v213 = vpop.f32.mrb[0].mxu0
  %v214 = vadd.f32 %v85, %v213
  %v215 = vpop.f32.mrb[0].mxu0
  %216 = vmatprep.mubr.f32.mxu0 0.0
  %217 = vmatmul.mubr.f32.gmra.mrb[0].mxu0 %v39
  %v218 = vpop.f32.mrb[0].mxu0
  %v219 = vadd.f32 %v85, %v218
  %v220 = vpop.f32.mrb[0].mxu0
  %221 = vmatprep.mubr.f32.mxu0 0.0
  %222 = vmatmul.mubr.f32.gmra.mrb[0].mxu0 %v40
  %v223 = vpop.f32.mrb[0].mxu0
  %v224 = vadd.f32 %v85, %v223
  %v225 = vpop.f32.mrb[0].mxu0
  %226 = vmatprep.mubr.f32.mxu0 0.0
  %227 = vmatmul.mubr.f32.gmra.mrb[0].mxu0 %v41
  %v228 = vpop.f32.mrb[0].mxu0
  %v229 = vadd.f32 %v85, %v228
  %v230 = vpop.f32.mrb[0].mxu0
  %231 = vmatprep.mubr.f32.mxu0 0.0
  %232 = vmatmul.mubr.f32.gmra.mrb[0].mxu0 %v42
  %v233 = vpop.f32.mrb[0].mxu0
  %v234 = vadd.f32 %v85, %v233
  %v235 = vpop.f32.mrb[0].mxu0
  %236 = vmatprep.mubr.f32.mxu0 0.0
  %237 = vmatmul.mubr.f32.gmra.mrb[0].mxu0 %v43
  %v238 = vpop.f32.mrb[0].mxu0
  %v239 = vadd.f32 %v85, %v238
  %v240 = vpop.f32.mrb[0].mxu0
  %241 = vmatprep.mubr.f32.mxu0 0.0
  %242 = vmatmul.mubr.f32.gmra.mrb[0].mxu0 %v44
  %v243 = vpop.f32.mrb[0].mxu0
  %v244 = vadd.f32 %v85, %v243
  %v245 = vpop.f32.mrb[0].mxu0
  %246 = vmatprep.mubr.f32.mxu0 0.0
  %247 = vmatmul.mubr.f32.gmra.mrb[0].mxu0 %v45
  %v248 = vpop.f32.mrb[0].mxu0
  %v249 = vadd.f32 %v85, %v248
  %v250 = vpop.f32.mrb[0].mxu0
  %251 = vmatprep.mubr.f32.mxu0 0.0
  %252 = vmatmul.mubr.f32.gmra.mrb[0].mxu0 %v46
  %v253 = vpop.f32.mrb[0].mxu0
  %v254 = vadd.f32 %v85, %v253
  %v255 = vpop.f32.mrb[0].mxu0
  %256 = vmatprep.mubr.f32.mxu0 0.0
  %257 = vmatmul.mubr.f32.gmra.mrb[0].mxu0 %v47
  %v258 = vpop.f32.mrb[0].mxu0
  %v259 = vadd.f32 %v85, %v258
  %v260 = vpop.f32.mrb[0].mxu0
  %261 = vmatprep.mubr.f32.mxu0 0.0
  %262 = vmatmul.mubr.f32.gmra.mrb[0].mxu0 %v48
  %v263 = vpop.f32.mrb[0].mxu0
  %v264 = vadd.f32 %v85, %v263
  %v265 = vpop.f32.mrb[0].mxu0
  %266 = vmatprep.mubr.f32.mxu0 0.0
  %267 = vmatmul.mubr.f32.gmra.mrb[0].mxu0 %v49
  %v268 = vpop.f32.mrb[0].mxu0
  %v269 = vadd.f32 %v85, %v268
  %v270 = vpop.f32.mrb[0].mxu0
  %271 = vmatprep.mubr.f32.mxu0 0.0
  %272 = vmatmul.mubr.f32.gmra.mrb[0].mxu0 %v50
  %v273 = vpop.f32.mrb[0].mxu0
  %v274 = vadd.f32 %v85, %v273
  %v275 = vpop.f32.mrb[0].mxu0
  %276 = vmatprep.mubr.f32.mxu0 0.0
  %277 = vmatmul.mubr.f32.gmra.mrb[0].mxu0 %v51
  %v278 = vpop.f32.mrb[0].mxu0
  %v279 = vadd.f32 %v85, %v278
  %v280 = vpop.f32.mrb[0].mxu0
  %281 = vmatprep.mubr.f32.mxu0 0.0
  %282 = vmatmul.mubr.f32.gmra.mrb[0].mxu0 %v52
  %v283 = vpop.f32.mrb[0].mxu0
  %v284 = vadd.f32 %v85, %v283
  %v285 = vpop.f32.mrb[0].mxu0
  %286 = vmatprep.mubr.f32.mxu0 0.0
  %287 = vmatmul.mubr.f32.gmra.mrb[0].mxu0 %v53
  %v288 = vpop.f32.mrb[0].mxu0
  %v289 = vadd.f32 %v85, %v288
  %v290 = vpop.f32.mrb[0].mxu0
  %291 = vmatprep.mubr.f32.mxu0 0.0
  %292 = vmatmul.mubr.f32.gmra.mrb[0].mxu0 %v54
  %v293 = vpop.f32.mrb[0].mxu0
  %v294 = vadd.f32 %v85, %v293
  %v295 = vpop.f32.mrb[0].mxu0
  %296 = vmatprep.mubr.f32.mxu0 0.0
  %297 = vmatmul.mubr.f32.gmra.mrb[0].mxu0 %v55
  %v298 = vpop.f32.mrb[0].mxu0
  %v299 = vadd.f32 %v85, %v298
  %v300 = vpop.f32.mrb[0].mxu0
  %301 = vmatprep.mubr.f32.mxu0 0.0
  %302 = vmatmul.mubr.f32.gmra.mrb[0].mxu0 %v56
  %v303 = vpop.f32.mrb[0].mxu0
  %v304 = vadd.f32 %v85, %v303
  %v305 = vpop.f32.mrb[0].mxu0
  %306 = vmatprep.mubr.f32.mxu0 0.0
  %307 = vmatmul.mubr.f32.gmra.mrb[0].mxu0 %v57
  %v308 = vpop.f32.mrb[0].mxu0
  %v309 = vadd.f32 %v85, %v308
  %v310 = vpop.f32.mrb[0].mxu0
  %311 = vmatprep.mubr.f32.mxu0 0.0
  %312 = vmatmul.mubr.f32.gmra.mrb[0].mxu0 %v58
  %v313 = vpop.f32.mrb[0].mxu0
  %v314 = vadd.f32 %v85, %v313
  %v315 = vpop.f32.mrb[0].mxu0
  %316 = vmatprep.mubr.f32.mxu0 0.0
  %317 = vmatmul.mubr.f32.gmra.mrb[0].mxu0 %v59
  %v318 = vpop.f32.mrb[0].mxu0
  %v319 = vadd.f32 %v85, %v318
  %v320 = vpop.f32.mrb[0].mxu0
  %321 = vmatprep.mubr.f32.mxu0 0.0
  %322 = vmatmul.mubr.f32.gmra.mrb[0].mxu0 %v60
  %v323 = vpop.f32.mrb[0].mxu0
  %v324 = vadd.f32 %v85, %v323
  %v325 = vpop.f32.mrb[0].mxu0
  %326 = vmatprep.mubr.f32.mxu0 0.0
  %327 = vmatmul.mubr.f32.gmra.mrb[0].mxu0 %v61
  %v328 = vpop.f32.mrb[0].mxu0
  %v329 = vadd.f32 %v85, %v328
  %v330 = vpop.f32.mrb[0].mxu0
  %331 = vmatprep.mubr.f32.mxu0 0.0
  %332 = vmatmul.mubr.f32.gmra.mrb[0].mxu0 %v62
  %v333 = vpop.f32.mrb[0].mxu0
  %v334 = vadd.f32 %v85, %v333
  %v335 = vpop.f32.mrb[0].mxu0
  %336 = vmatprep.mubr.f32.mxu0 0.0
  %337 = vmatmul.mubr.f32.gmra.mrb[0].mxu0 %v63
  %v338 = vpop.f32.mrb[0].mxu0
  %v339 = vadd.f32 %v85, %v338
  %v340 = vpop.f32.mrb[0].mxu0
  %341 = vdwg.mxu0
  %v342 = vmax.f32 %v154, 0.0
  %v343 = vmax.f32 %v159, 0.0
  %v344 = vmax.f32 %v164, 0.0
  %v345 = vmax.f32 %v169, 0.0
  %v346 = vmax.f32 %v174, 0.0
  %v347 = vmax.f32 %v179, 0.0
  %v348 = vmax.f32 %v184, 0.0
  %v349 = vmax.f32 %v189, 0.0
  %v350 = vmax.f32 %v194, 0.0
  %v351 = vmax.f32 %v199, 0.0
  %v352 = vmax.f32 %v204, 0.0
  %v353 = vmax.f32 %v209, 0.0
  %v354 = vmax.f32 %v214, 0.0
  %v355 = vmax.f32 %v219, 0.0
  %v356 = vmax.f32 %v224, 0.0
  %v357 = vmax.f32 %v229, 0.0
  %v358 = vmax.f32 %v234, 0.0
  %v359 = vmax.f32 %v239, 0.0
  %v360 = vmax.f32 %v244, 0.0
  %v361 = vmax.f32 %v249, 0.0
  %v362 = vmax.f32 %v254, 0.0
  %v363 = vmax.f32 %v259, 0.0
  %v364 = vmax.f32 %v264, 0.0
  %v365 = vmax.f32 %v269, 0.0
  %v366 = vmax.f32 %v274, 0.0
  %v367 = vmax.f32 %v279, 0.0
  %v368 = vmax.f32 %v284, 0.0
  %v369 = vmax.f32 %v289, 0.0
  %v370 = vmax.f32 %v294, 0.0
  %v371 = vmax.f32 %v299, 0.0
  %v372 = vmax.f32 %v304, 0.0
  %v373 = vmax.f32 %v309, 0.0
  %v374 = vmax.f32 %v314, 0.0
  %v375 = vmax.f32 %v319, 0.0
  %v376 = vmax.f32 %v324, 0.0
  %v377 = vmax.f32 %v329, 0.0
  %v378 = vmax.f32 %v334, 0.0
  %v379 = vmax.f32 %v339, 0.0
  %v380 = vld [vmem:[%s3] sm:$0xff]
  %v381 = vld [vmem:[%s3 + $0x8] sm:$0xff]
  %v382 = vld [vmem:[%s3 + $0x10] sm:$0xff]
  %v383 = vld [vmem:[%s3 + $0x18] sm:$0xff]
  %v384 = vld [vmem:[%s3 + $0x20] sm:$0xff]
  %v385 = vld [vmem:[%s3 + $0x28] sm:$0xff]
  %v386 = vld [vmem:[%s3 + $0x30] sm:$0xff]
  %v387 = vld [vmem:[%s3 + $0x38] sm:$0xff]
  %v388 = vld [vmem:[%s3 + $0x40] sm:$0xff]
  %v389 = vld [vmem:[%s3 + $0x48] sm:$0xff]
  %v390 = vld [vmem:[%s3 + $0x50] sm:$0xff]
  %v391 = vld [vmem:[%s3 + $0x58] sm:$0xff]
  %v392 = vld [vmem:[%s3 + $0x60] sm:$0xff]
  %v393 = vld [vmem:[%s3 + $0x68] sm:$0xff]
  %v394 = vld [vmem:[%s3 + $0x70] sm:$0xff]
  %v395 = vld [vmem:[%s3 + $0x78] sm:$0xff]
  %v396 = vld [vmem:[%s4] sm:$0x1]
  %v398 = vlaneseq
  %v399 = vshrl.u32 %v398, 7
  %v400 = vsub.s32 0, %v399
  %v401 = vrot.slane %v396, %v400
  %403 = vmatprep.subr.mxu0 0.0
  %404 = vmatpush1.msra.mxu0 %v380
  %405 = vmatprep.subr.mxu0 0.0
  %406 = vmatpush1.msra.mxu0 %v381
  %407 = vmatprep.subr.mxu0 0.0
  %408 = vmatpush1.msra.mxu0 %v382
  %409 = vmatprep.subr.mxu0 0.0
  %410 = vmatpush1.msra.mxu0 %v383
  %411 = vmatprep.subr.mxu0 0.0
  %412 = vmatpush1.msra.mxu0 %v384
  %413 = vmatprep.subr.mxu0 0.0
  %414 = vmatpush1.msra.mxu0 %v385
  %415 = vmatprep.subr.mxu0 0.0
  %416 = vmatpush1.msra.mxu0 %v386
  %417 = vmatprep.subr.mxu0 0.0
  %418 = vmatpush1.msra.mxu0 %v387
  %419 = vmatprep.subr.mxu0 0.0
  %420 = vmatpush1.msra.mxu0 %v388
  %421 = vmatprep.subr.mxu0 0.0
  %422 = vmatpush1.msra.mxu0 %v389
  %423 = vmatprep.subr.mxu0 0.0
  %424 = vmatpush1.msra.mxu0 %v390
  %425 = vmatprep.subr.mxu0 0.0
  %426 = vmatpush1.msra.mxu0 %v391
  %427 = vmatprep.subr.mxu0 0.0
  %428 = vmatpush1.msra.mxu0 %v392
  %429 = vmatprep.subr.mxu0 0.0
  %430 = vmatpush1.msra.mxu0 %v393
  %431 = vmatprep.subr.mxu0 0.0
  %432 = vmatpush1.msra.mxu0 %v394
  %433 = vmatprep.subr.mxu0 0.0
  %434 = vmatpush1.msra.mxu0 %v395
  %435 = vmatprep.subr.mxu0 0.0
  %436 = vmatpush1.msra.mxu0 0.0
  %437 = vmatprep.subr.mxu0 0.0
  %438 = vmatpush1.msra.mxu0 0.0
  %439 = vmatprep.subr.mxu0 0.0
  %440 = vmatpush1.msra.mxu0 0.0
  %441 = vmatprep.subr.mxu0 0.0
  %442 = vmatpush1.msra.mxu0 0.0
  %443 = vmatprep.subr.mxu0 0.0
  %444 = vmatpush1.msra.mxu0 0.0
  %445 = vmatprep.subr.mxu0 0.0
  %446 = vmatpush1.msra.mxu0 0.0
  %447 = vmatprep.subr.mxu0 0.0
  %448 = vmatpush1.msra.mxu0 0.0
  %449 = vmatprep.subr.mxu0 0.0
  %450 = vmatpush1.msra.mxu0 0.0
  %451 = vmatprep.subr.mxu0 0.0
  %452 = vmatpush1.msra.mxu0 0.0
  %453 = vmatprep.subr.mxu0 0.0
  %454 = vmatpush1.msra.mxu0 0.0
  %455 = vmatprep.subr.mxu0 0.0
  %456 = vmatpush1.msra.mxu0 0.0
  %457 = vmatprep.subr.mxu0 0.0
  %458 = vmatpush1.msra.mxu0 0.0
  %459 = vmatprep.subr.mxu0 0.0
  %460 = vmatpush1.msra.mxu0 0.0
  %461 = vmatprep.subr.mxu0 0.0
  %462 = vmatpush1.msra.mxu0 0.0
  %463 = vmatprep.subr.mxu0 0.0
  %464 = vmatpush1.msra.mxu0 0.0
  %465 = vmatprep.subr.mxu0 0.0
  %466 = vmatpush1.msra.mxu0 0.0
  %467 = vmatprep.mubr.f32.mxu0 0.0
  %468 = vmatmul.mubr.f32.gmra.mrb[0].mxu0 %v342
  %v469 = vpop.f32.mrb[0].mxu0
  %v470 = vadd.f32 %v401, %v469
  %v471 = vpop.f32.mrb[0].mxu0
  %472 = vmatprep.mubr.f32.mxu0 0.0
  %473 = vmatmul.mubr.f32.gmra.mrb[0].mxu0 %v343
  %v474 = vpop.f32.mrb[0].mxu0
  %v475 = vadd.f32 %v401, %v474
  %v476 = vpop.f32.mrb[0].mxu0
  %477 = vmatprep.mubr.f32.mxu0 0.0
  %478 = vmatmul.mubr.f32.gmra.mrb[0].mxu0 %v344
  %v479 = vpop.f32.mrb[0].mxu0
  %v480 = vadd.f32 %v401, %v479
  %v481 = vpop.f32.mrb[0].mxu0
  %482 = vmatprep.mubr.f32.mxu0 0.0
  %483 = vmatmul.mubr.f32.gmra.mrb[0].mxu0 %v345
  %v484 = vpop.f32.mrb[0].mxu0
  %v485 = vadd.f32 %v401, %v484
  %v486 = vpop.f32.mrb[0].mxu0
  %487 = vmatprep.mubr.f32.mxu0 0.0
  %488 = vmatmul.mubr.f32.gmra.mrb[0].mxu0 %v346
  %v489 = vpop.f32.mrb[0].mxu0
  %v490 = vadd.f32 %v401, %v489
  %v491 = vpop.f32.mrb[0].mxu0
  %492 = vmatprep.mubr.f32.mxu0 0.0
  %493 = vmatmul.mubr.f32.gmra.mrb[0].mxu0 %v347
  %v494 = vpop.f32.mrb[0].mxu0
  %v495 = vadd.f32 %v401, %v494
  %v496 = vpop.f32.mrb[0].mxu0
  %497 = vmatprep.mubr.f32.mxu0 0.0
  %498 = vmatmul.mubr.f32.gmra.mrb[0].mxu0 %v348
  %v499 = vpop.f32.mrb[0].mxu0
  %v500 = vadd.f32 %v401, %v499
  %v501 = vpop.f32.mrb[0].mxu0
  %502 = vmatprep.mubr.f32.mxu0 0.0
  %503 = vmatmul.mubr.f32.gmra.mrb[0].mxu0 %v349
  %v504 = vpop.f32.mrb[0].mxu0
  %v505 = vadd.f32 %v401, %v504
  %v506 = vpop.f32.mrb[0].mxu0
  %507 = vmatprep.mubr.f32.mxu0 0.0
  %508 = vmatmul.mubr.f32.gmra.mrb[0].mxu0 %v350
  %v509 = vpop.f32.mrb[0].mxu0
  %v510 = vadd.f32 %v401, %v509
  %v511 = vpop.f32.mrb[0].mxu0
  %512 = vmatprep.mubr.f32.mxu0 0.0
  %513 = vmatmul.mubr.f32.gmra.mrb[0].mxu0 %v351
  %v514 = vpop.f32.mrb[0].mxu0
  %v515 = vadd.f32 %v401, %v514
  %v516 = vpop.f32.mrb[0].mxu0
  %517 = vmatprep.mubr.f32.mxu0 0.0
  %518 = vmatmul.mubr.f32.gmra.mrb[0].mxu0 %v352
  %v519 = vpop.f32.mrb[0].mxu0
  %v520 = vadd.f32 %v401, %v519
  %v521 = vpop.f32.mrb[0].mxu0
  %522 = vmatprep.mubr.f32.mxu0 0.0
  %523 = vmatmul.mubr.f32.gmra.mrb[0].mxu0 %v353
  %v524 = vpop.f32.mrb[0].mxu0
  %v525 = vadd.f32 %v401, %v524
  %v526 = vpop.f32.mrb[0].mxu0
  %527 = vmatprep.mubr.f32.mxu0 0.0
  %528 = vmatmul.mubr.f32.gmra.mrb[0].mxu0 %v354
  %v529 = vpop.f32.mrb[0].mxu0
  %v530 = vadd.f32 %v401, %v529
  %v531 = vpop.f32.mrb[0].mxu0
  %532 = vmatprep.mubr.f32.mxu0 0.0
  %533 = vmatmul.mubr.f32.gmra.mrb[0].mxu0 %v355
  %v534 = vpop.f32.mrb[0].mxu0
  %v535 = vadd.f32 %v401, %v534
  %v536 = vpop.f32.mrb[0].mxu0
  %537 = vmatprep.mubr.f32.mxu0 0.0
  %538 = vmatmul.mubr.f32.gmra.mrb[0].mxu0 %v356
  %v539 = vpop.f32.mrb[0].mxu0
  %v540 = vadd.f32 %v401, %v539
  %v541 = vpop.f32.mrb[0].mxu0
  %542 = vmatprep.mubr.f32.mxu0 0.0
  %543 = vmatmul.mubr.f32.gmra.mrb[0].mxu0 %v357
  %v544 = vpop.f32.mrb[0].mxu0
  %v545 = vadd.f32 %v401, %v544
  %v546 = vpop.f32.mrb[0].mxu0
  %547 = vmatprep.mubr.f32.mxu0 0.0
  %548 = vmatmul.mubr.f32.gmra.mrb[0].mxu0 %v358
  %v549 = vpop.f32.mrb[0].mxu0
  %v550 = vadd.f32 %v401, %v549
  %v551 = vpop.f32.mrb[0].mxu0
  %552 = vmatprep.mubr.f32.mxu0 0.0
  %553 = vmatmul.mubr.f32.gmra.mrb[0].mxu0 %v359
  %v554 = vpop.f32.mrb[0].mxu0
  %v555 = vadd.f32 %v401, %v554
  %v556 = vpop.f32.mrb[0].mxu0
  %557 = vmatprep.mubr.f32.mxu0 0.0
  %558 = vmatmul.mubr.f32.gmra.mrb[0].mxu0 %v360
  %v559 = vpop.f32.mrb[0].mxu0
  %v560 = vadd.f32 %v401, %v559
  %v561 = vpop.f32.mrb[0].mxu0
  %562 = vmatprep.mubr.f32.mxu0 0.0
  %563 = vmatmul.mubr.f32.gmra.mrb[0].mxu0 %v361
  %v564 = vpop.f32.mrb[0].mxu0
  %v565 = vadd.f32 %v401, %v564
  %v566 = vpop.f32.mrb[0].mxu0
  %567 = vmatprep.mubr.f32.mxu0 0.0
  %568 = vmatmul.mubr.f32.gmra.mrb[0].mxu0 %v362
  %v569 = vpop.f32.mrb[0].mxu0
  %v570 = vadd.f32 %v401, %v569
  %v571 = vpop.f32.mrb[0].mxu0
  %572 = vmatprep.mubr.f32.mxu0 0.0
  %573 = vmatmul.mubr.f32.gmra.mrb[0].mxu0 %v363
  %v574 = vpop.f32.mrb[0].mxu0
  %v575 = vadd.f32 %v401, %v574
  %v576 = vpop.f32.mrb[0].mxu0
  %577 = vmatprep.mubr.f32.mxu0 0.0
  %578 = vmatmul.mubr.f32.gmra.mrb[0].mxu0 %v364
  %v579 = vpop.f32.mrb[0].mxu0
  %v580 = vadd.f32 %v401, %v579
  %v581 = vpop.f32.mrb[0].mxu0
  %582 = vmatprep.mubr.f32.mxu0 0.0
  %583 = vmatmul.mubr.f32.gmra.mrb[0].mxu0 %v365
  %v584 = vpop.f32.mrb[0].mxu0
  %v585 = vadd.f32 %v401, %v584
  %v586 = vpop.f32.mrb[0].mxu0
  %587 = vmatprep.mubr.f32.mxu0 0.0
  %588 = vmatmul.mubr.f32.gmra.mrb[0].mxu0 %v366
  %v589 = vpop.f32.mrb[0].mxu0
  %v590 = vadd.f32 %v401, %v589
  %v591 = vpop.f32.mrb[0].mxu0
  %592 = vmatprep.mubr.f32.mxu0 0.0
  %593 = vmatmul.mubr.f32.gmra.mrb[0].mxu0 %v367
  %v594 = vpop.f32.mrb[0].mxu0
  %v595 = vadd.f32 %v401, %v594
  %v596 = vpop.f32.mrb[0].mxu0
  %597 = vmatprep.mubr.f32.mxu0 0.0
  %598 = vmatmul.mubr.f32.gmra.mrb[0].mxu0 %v368
  %v599 = vpop.f32.mrb[0].mxu0
  %v600 = vadd.f32 %v401, %v599
  %v601 = vpop.f32.mrb[0].mxu0
  %602 = vmatprep.mubr.f32.mxu0 0.0
  %603 = vmatmul.mubr.f32.gmra.mrb[0].mxu0 %v369
  %v604 = vpop.f32.mrb[0].mxu0
  %v605 = vadd.f32 %v401, %v604
  %v606 = vpop.f32.mrb[0].mxu0
  %607 = vmatprep.mubr.f32.mxu0 0.0
  %608 = vmatmul.mubr.f32.gmra.mrb[0].mxu0 %v370
  %v609 = vpop.f32.mrb[0].mxu0
  %v610 = vadd.f32 %v401, %v609
  %v611 = vpop.f32.mrb[0].mxu0
  %612 = vmatprep.mubr.f32.mxu0 0.0
  %613 = vmatmul.mubr.f32.gmra.mrb[0].mxu0 %v371
  %v614 = vpop.f32.mrb[0].mxu0
  %v615 = vadd.f32 %v401, %v614
  %v616 = vpop.f32.mrb[0].mxu0
  %617 = vmatprep.mubr.f32.mxu0 0.0
  %618 = vmatmul.mubr.f32.gmra.mrb[0].mxu0 %v372
  %v619 = vpop.f32.mrb[0].mxu0
  %v620 = vadd.f32 %v401, %v619
  %v621 = vpop.f32.mrb[0].mxu0
  %622 = vmatprep.mubr.f32.mxu0 0.0
  %623 = vmatmul.mubr.f32.gmra.mrb[0].mxu0 %v373
  %v624 = vpop.f32.mrb[0].mxu0
  %v625 = vadd.f32 %v401, %v624
  %v626 = vpop.f32.mrb[0].mxu0
  %627 = vmatprep.mubr.f32.mxu0 0.0
  %628 = vmatmul.mubr.f32.gmra.mrb[0].mxu0 %v374
  %v629 = vpop.f32.mrb[0].mxu0
  %v630 = vadd.f32 %v401, %v629
  %v631 = vpop.f32.mrb[0].mxu0
  %632 = vmatprep.mubr.f32.mxu0 0.0
  %633 = vmatmul.mubr.f32.gmra.mrb[0].mxu0 %v375
  %v634 = vpop.f32.mrb[0].mxu0
  %v635 = vadd.f32 %v401, %v634
  %v636 = vpop.f32.mrb[0].mxu0
  %637 = vmatprep.mubr.f32.mxu0 0.0
  %638 = vmatmul.mubr.f32.gmra.mrb[0].mxu0 %v376
  %v639 = vpop.f32.mrb[0].mxu0
  %v640 = vadd.f32 %v401, %v639
  %v641 = vpop.f32.mrb[0].mxu0
  %642 = vmatprep.mubr.f32.mxu0 0.0
  %643 = vmatmul.mubr.f32.gmra.mrb[0].mxu0 %v377
  %v644 = vpop.f32.mrb[0].mxu0
  %v645 = vadd.f32 %v401, %v644
  %v646 = vpop.f32.mrb[0].mxu0
  %647 = vmatprep.mubr.f32.mxu0 0.0
  %648 = vmatmul.mubr.f32.gmra.mrb[0].mxu0 %v378
  %v649 = vpop.f32.mrb[0].mxu0
  %v650 = vadd.f32 %v401, %v649
  %v651 = vpop.f32.mrb[0].mxu0
  %652 = vmatprep.mubr.f32.mxu0 0.0
  %653 = vmatmul.mubr.f32.gmra.mrb[0].mxu0 %v379
  %v654 = vpop.f32.mrb[0].mxu0
  %v655 = vadd.f32 %v401, %v654
  %v656 = vpop.f32.mrb[0].mxu0
  %657 = vdwg.mxu0
  %v658 = vmax.f32 %v470, 0.0
  %v659 = vmax.f32 %v475, 0.0
  %v660 = vmax.f32 %v480, 0.0
  %v661 = vmax.f32 %v485, 0.0
  %v662 = vmax.f32 %v490, 0.0
  %v663 = vmax.f32 %v495, 0.0
  %v664 = vmax.f32 %v500, 0.0
  %v665 = vmax.f32 %v505, 0.0
  %v666 = vmax.f32 %v510, 0.0
  %v667 = vmax.f32 %v515, 0.0
  %v668 = vmax.f32 %v520, 0.0
  %v669 = vmax.f32 %v525, 0.0
  %v670 = vmax.f32 %v530, 0.0
  %v671 = vmax.f32 %v535, 0.0
  %v672 = vmax.f32 %v540, 0.0
  %v673 = vmax.f32 %v545, 0.0
  %v674 = vmax.f32 %v550, 0.0
  %v675 = vmax.f32 %v555, 0.0
  %v676 = vmax.f32 %v560, 0.0
  %v677 = vmax.f32 %v565, 0.0
  %v678 = vmax.f32 %v570, 0.0
  %v679 = vmax.f32 %v575, 0.0
  %v680 = vmax.f32 %v580, 0.0
  %v681 = vmax.f32 %v585, 0.0
  %v682 = vmax.f32 %v590, 0.0
  %v683 = vmax.f32 %v595, 0.0
  %v684 = vmax.f32 %v600, 0.0
  %v685 = vmax.f32 %v605, 0.0
  %v686 = vmax.f32 %v610, 0.0
  %v687 = vmax.f32 %v615, 0.0
  %v688 = vmax.f32 %v620, 0.0
  %v689 = vmax.f32 %v625, 0.0
  %v690 = vmax.f32 %v630, 0.0
  %v691 = vmax.f32 %v635, 0.0
  %v692 = vmax.f32 %v640, 0.0
  %v693 = vmax.f32 %v645, 0.0
  %v694 = vmax.f32 %v650, 0.0
  %v695 = vmax.f32 %v655, 0.0
  %v696 = vld [vmem:[%s5] sm:$0xff]
  %v697 = vld [vmem:[%s5 + $0x8] sm:$0xff]
  %v698 = vld [vmem:[%s5 + $0x10] sm:$0xff]
  %v699 = vld [vmem:[%s5 + $0x18] sm:$0xff]
  %v700 = vld [vmem:[%s5 + $0x20] sm:$0xff]
  %v701 = vld [vmem:[%s5 + $0x28] sm:$0xff]
  %v702 = vld [vmem:[%s5 + $0x30] sm:$0xff]
  %v703 = vld [vmem:[%s5 + $0x38] sm:$0xff]
  %v704 = vld [vmem:[%s5 + $0x40] sm:$0xff]
  %v705 = vld [vmem:[%s5 + $0x48] sm:$0xff]
  %v706 = vld [vmem:[%s5 + $0x50] sm:$0xff]
  %v707 = vld [vmem:[%s5 + $0x58] sm:$0xff]
  %v708 = vld [vmem:[%s5 + $0x60] sm:$0xff]
  %v709 = vld [vmem:[%s5 + $0x68] sm:$0xff]
  %v710 = vld [vmem:[%s5 + $0x70] sm:$0xff]
  %v711 = vld [vmem:[%s5 + $0x78] sm:$0xff]
  %v712 = vld [vmem:[%s6] sm:$0x1]
  %v714 = vlaneseq
  %v715 = vshrl.u32 %v714, 7
  %v716 = vsub.s32 0, %v715
  %v717 = vrot.slane %v712, %v716
  %719 = vmatprep.subr.mxu0 0.0
  %720 = vmatpush1.msra.mxu0 %v696
  %721 = vmatprep.subr.mxu0 0.0
  %722 = vmatpush1.msra.mxu0 %v697
  %723 = vmatprep.subr.mxu0 0.0
  %724 = vmatpush1.msra.mxu0 %v698
  %725 = vmatprep.subr.mxu0 0.0
  %726 = vmatpush1.msra.mxu0 %v699
  %727 = vmatprep.subr.mxu0 0.0
  %728 = vmatpush1.msra.mxu0 %v700
  %729 = vmatprep.subr.mxu0 0.0
  %730 = vmatpush1.msra.mxu0 %v701
  %731 = vmatprep.subr.mxu0 0.0
  %732 = vmatpush1.msra.mxu0 %v702
  %733 = vmatprep.subr.mxu0 0.0
  %734 = vmatpush1.msra.mxu0 %v703
  %735 = vmatprep.subr.mxu0 0.0
  %736 = vmatpush1.msra.mxu0 %v704
  %737 = vmatprep.subr.mxu0 0.0
  %738 = vmatpush1.msra.mxu0 %v705
  %739 = vmatprep.subr.mxu0 0.0
  %740 = vmatpush1.msra.mxu0 %v706
  %741 = vmatprep.subr.mxu0 0.0
  %742 = vmatpush1.msra.mxu0 %v707
  %743 = vmatprep.subr.mxu0 0.0
  %744 = vmatpush1.msra.mxu0 %v708
  %745 = vmatprep.subr.mxu0 0.0
  %746 = vmatpush1.msra.mxu0 %v709
  %747 = vmatprep.subr.mxu0 0.0
  %748 = vmatpush1.msra.mxu0 %v710
  %749 = vmatprep.subr.mxu0 0.0
  %750 = vmatpush1.msra.mxu0 %v711
  %751 = vmatprep.subr.mxu0 0.0
  %752 = vmatpush1.msra.mxu0 0.0
  %753 = vmatprep.subr.mxu0 0.0
  %754 = vmatpush1.msra.mxu0 0.0
  %755 = vmatprep.subr.mxu0 0.0
  %756 = vmatpush1.msra.mxu0 0.0
  %757 = vmatprep.subr.mxu0 0.0
  %758 = vmatpush1.msra.mxu0 0.0
  %759 = vmatprep.subr.mxu0 0.0
  %760 = vmatpush1.msra.mxu0 0.0
  %761 = vmatprep.subr.mxu0 0.0
  %762 = vmatpush1.msra.mxu0 0.0
  %763 = vmatprep.subr.mxu0 0.0
  %764 = vmatpush1.msra.mxu0 0.0
  %765 = vmatprep.subr.mxu0 0.0
  %766 = vmatpush1.msra.mxu0 0.0
  %767 = vmatprep.subr.mxu0 0.0
  %768 = vmatpush1.msra.mxu0 0.0
  %769 = vmatprep.subr.mxu0 0.0
  %770 = vmatpush1.msra.mxu0 0.0
  %771 = vmatprep.subr.mxu0 0.0
  %772 = vmatpush1.msra.mxu0 0.0
  %773 = vmatprep.subr.mxu0 0.0
  %774 = vmatpush1.msra.mxu0 0.0
  %775 = vmatprep.subr.mxu0 0.0
  %776 = vmatpush1.msra.mxu0 0.0
  %777 = vmatprep.subr.mxu0 0.0
  %778 = vmatpush1.msra.mxu0 0.0
  %779 = vmatprep.subr.mxu0 0.0
  %780 = vmatpush1.msra.mxu0 0.0
  %781 = vmatprep.subr.mxu0 0.0
  %782 = vmatpush1.msra.mxu0 0.0
  %783 = vmatprep.mubr.f32.mxu0 0.0
  %784 = vmatmul.mubr.f32.gmra.mrb[0].mxu0 %v658
  %v785 = vpop.f32.mrb[0].mxu0
  %v786 = vadd.f32 %v717, %v785
  %v787 = vpop.f32.mrb[0].mxu0
  %788 = vmatprep.mubr.f32.mxu0 0.0
  %789 = vmatmul.mubr.f32.gmra.mrb[0].mxu0 %v659
  %v790 = vpop.f32.mrb[0].mxu0
  %v791 = vadd.f32 %v717, %v790
  %v792 = vpop.f32.mrb[0].mxu0
  %793 = vmatprep.mubr.f32.mxu0 0.0
  %794 = vmatmul.mubr.f32.gmra.mrb[0].mxu0 %v660
  %v795 = vpop.f32.mrb[0].mxu0
  %v796 = vadd.f32 %v717, %v795
  %v797 = vpop.f32.mrb[0].mxu0
  %798 = vmatprep.mubr.f32.mxu0 0.0
  %799 = vmatmul.mubr.f32.gmra.mrb[0].mxu0 %v661
  %v800 = vpop.f32.mrb[0].mxu0
  %v801 = vadd.f32 %v717, %v800
  %v802 = vpop.f32.mrb[0].mxu0
  %803 = vmatprep.mubr.f32.mxu0 0.0
  %804 = vmatmul.mubr.f32.gmra.mrb[0].mxu0 %v662
  %v805 = vpop.f32.mrb[0].mxu0
  %v806 = vadd.f32 %v717, %v805
  %v807 = vpop.f32.mrb[0].mxu0
  %808 = vmatprep.mubr.f32.mxu0 0.0
  %809 = vmatmul.mubr.f32.gmra.mrb[0].mxu0 %v663
  %v810 = vpop.f32.mrb[0].mxu0
  %v811 = vadd.f32 %v717, %v810
  %v812 = vpop.f32.mrb[0].mxu0
  %813 = vmatprep.mubr.f32.mxu0 0.0
  %814 = vmatmul.mubr.f32.gmra.mrb[0].mxu0 %v664
  %v815 = vpop.f32.mrb[0].mxu0
  %v816 = vadd.f32 %v717, %v815
  %v817 = vpop.f32.mrb[0].mxu0
  %818 = vmatprep.mubr.f32.mxu0 0.0
  %819 = vmatmul.mubr.f32.gmra.mrb[0].mxu0 %v665
  %v820 = vpop.f32.mrb[0].mxu0
  %v821 = vadd.f32 %v717, %v820
  %v822 = vpop.f32.mrb[0].mxu0
  %823 = vmatprep.mubr.f32.mxu0 0.0
  %824 = vmatmul.mubr.f32.gmra.mrb[0].mxu0 %v666
  %v825 = vpop.f32.mrb[0].mxu0
  %v826 = vadd.f32 %v717, %v825
  %v827 = vpop.f32.mrb[0].mxu0
  %828 = vmatprep.mubr.f32.mxu0 0.0
  %829 = vmatmul.mubr.f32.gmra.mrb[0].mxu0 %v667
  %v830 = vpop.f32.mrb[0].mxu0
  %v831 = vadd.f32 %v717, %v830
  %v832 = vpop.f32.mrb[0].mxu0
  %833 = vmatprep.mubr.f32.mxu0 0.0
  %834 = vmatmul.mubr.f32.gmra.mrb[0].mxu0 %v668
  %v835 = vpop.f32.mrb[0].mxu0
  %v836 = vadd.f32 %v717, %v835
  %v837 = vpop.f32.mrb[0].mxu0
  %838 = vmatprep.mubr.f32.mxu0 0.0
  %839 = vmatmul.mubr.f32.gmra.mrb[0].mxu0 %v669
  %v840 = vpop.f32.mrb[0].mxu0
  %v841 = vadd.f32 %v717, %v840
  %v842 = vpop.f32.mrb[0].mxu0
  %843 = vmatprep.mubr.f32.mxu0 0.0
  %844 = vmatmul.mubr.f32.gmra.mrb[0].mxu0 %v670
  %v845 = vpop.f32.mrb[0].mxu0
  %v846 = vadd.f32 %v717, %v845
  %v847 = vpop.f32.mrb[0].mxu0
  %848 = vmatprep.mubr.f32.mxu0 0.0
  %849 = vmatmul.mubr.f32.gmra.mrb[0].mxu0 %v671
  %v850 = vpop.f32.mrb[0].mxu0
  %v851 = vadd.f32 %v717, %v850
  %v852 = vpop.f32.mrb[0].mxu0
  %853 = vmatprep.mubr.f32.mxu0 0.0
  %854 = vmatmul.mubr.f32.gmra.mrb[0].mxu0 %v672
  %v855 = vpop.f32.mrb[0].mxu0
  %v856 = vadd.f32 %v717, %v855
  %v857 = vpop.f32.mrb[0].mxu0
  %858 = vmatprep.mubr.f32.mxu0 0.0
  %859 = vmatmul.mubr.f32.gmra.mrb[0].mxu0 %v673
  %v860 = vpop.f32.mrb[0].mxu0
  %v861 = vadd.f32 %v717, %v860
  %v862 = vpop.f32.mrb[0].mxu0
  %863 = vmatprep.mubr.f32.mxu0 0.0
  %864 = vmatmul.mubr.f32.gmra.mrb[0].mxu0 %v674
  %v865 = vpop.f32.mrb[0].mxu0
  %v866 = vadd.f32 %v717, %v865
  %v867 = vpop.f32.mrb[0].mxu0
  %868 = vmatprep.mubr.f32.mxu0 0.0
  %869 = vmatmul.mubr.f32.gmra.mrb[0].mxu0 %v675
  %v870 = vpop.f32.mrb[0].mxu0
  %v871 = vadd.f32 %v717, %v870
  %v872 = vpop.f32.mrb[0].mxu0
  %873 = vmatprep.mubr.f32.mxu0 0.0
  %874 = vmatmul.mubr.f32.gmra.mrb[0].mxu0 %v676
  %v875 = vpop.f32.mrb[0].mxu0
  %v876 = vadd.f32 %v717, %v875
  %v877 = vpop.f32.mrb[0].mxu0
  %878 = vmatprep.mubr.f32.mxu0 0.0
  %879 = vmatmul.mubr.f32.gmra.mrb[0].mxu0 %v677
  %v880 = vpop.f32.mrb[0].mxu0
  %v881 = vadd.f32 %v717, %v880
  %v882 = vpop.f32.mrb[0].mxu0
  %883 = vmatprep.mubr.f32.mxu0 0.0
  %884 = vmatmul.mubr.f32.gmra.mrb[0].mxu0 %v678
  %v885 = vpop.f32.mrb[0].mxu0
  %v886 = vadd.f32 %v717, %v885
  %v887 = vpop.f32.mrb[0].mxu0
  %888 = vmatprep.mubr.f32.mxu0 0.0
  %889 = vmatmul.mubr.f32.gmra.mrb[0].mxu0 %v679
  %v890 = vpop.f32.mrb[0].mxu0
  %v891 = vadd.f32 %v717, %v890
  %v892 = vpop.f32.mrb[0].mxu0
  %893 = vmatprep.mubr.f32.mxu0 0.0
  %894 = vmatmul.mubr.f32.gmra.mrb[0].mxu0 %v680
  %v895 = vpop.f32.mrb[0].mxu0
  %v896 = vadd.f32 %v717, %v895
  %v897 = vpop.f32.mrb[0].mxu0
  %898 = vmatprep.mubr.f32.mxu0 0.0
  %899 = vmatmul.mubr.f32.gmra.mrb[0].mxu0 %v681
  %v900 = vpop.f32.mrb[0].mxu0
  %v901 = vadd.f32 %v717, %v900
  %v902 = vpop.f32.mrb[0].mxu0
  %903 = vmatprep.mubr.f32.mxu0 0.0
  %904 = vmatmul.mubr.f32.gmra.mrb[0].mxu0 %v682
  %v905 = vpop.f32.mrb[0].mxu0
  %v906 = vadd.f32 %v717, %v905
  %v907 = vpop.f32.mrb[0].mxu0
  %908 = vmatprep.mubr.f32.mxu0 0.0
  %909 = vmatmul.mubr.f32.gmra.mrb[0].mxu0 %v683
  %v910 = vpop.f32.mrb[0].mxu0
  %v911 = vadd.f32 %v717, %v910
  %v912 = vpop.f32.mrb[0].mxu0
  %913 = vmatprep.mubr.f32.mxu0 0.0
  %914 = vmatmul.mubr.f32.gmra.mrb[0].mxu0 %v684
  %v915 = vpop.f32.mrb[0].mxu0
  %v916 = vadd.f32 %v717, %v915
  %v917 = vpop.f32.mrb[0].mxu0
  %918 = vmatprep.mubr.f32.mxu0 0.0
  %919 = vmatmul.mubr.f32.gmra.mrb[0].mxu0 %v685
  %v920 = vpop.f32.mrb[0].mxu0
  %v921 = vadd.f32 %v717, %v920
  %v922 = vpop.f32.mrb[0].mxu0
  %923 = vmatprep.mubr.f32.mxu0 0.0
  %924 = vmatmul.mubr.f32.gmra.mrb[0].mxu0 %v686
  %v925 = vpop.f32.mrb[0].mxu0
  %v926 = vadd.f32 %v717, %v925
  %v927 = vpop.f32.mrb[0].mxu0
  %928 = vmatprep.mubr.f32.mxu0 0.0
  %929 = vmatmul.mubr.f32.gmra.mrb[0].mxu0 %v687
  %v930 = vpop.f32.mrb[0].mxu0
  %v931 = vadd.f32 %v717, %v930
  %v932 = vpop.f32.mrb[0].mxu0
  %933 = vmatprep.mubr.f32.mxu0 0.0
  %934 = vmatmul.mubr.f32.gmra.mrb[0].mxu0 %v688
  %v935 = vpop.f32.mrb[0].mxu0
  %v936 = vadd.f32 %v717, %v935
  %v937 = vpop.f32.mrb[0].mxu0
  %938 = vmatprep.mubr.f32.mxu0 0.0
  %939 = vmatmul.mubr.f32.gmra.mrb[0].mxu0 %v689
  %v940 = vpop.f32.mrb[0].mxu0
  %v941 = vadd.f32 %v717, %v940
  %v942 = vpop.f32.mrb[0].mxu0
  %943 = vmatprep.mubr.f32.mxu0 0.0
  %944 = vmatmul.mubr.f32.gmra.mrb[0].mxu0 %v690
  %v945 = vpop.f32.mrb[0].mxu0
  %v946 = vadd.f32 %v717, %v945
  %v947 = vpop.f32.mrb[0].mxu0
  %948 = vmatprep.mubr.f32.mxu0 0.0
  %949 = vmatmul.mubr.f32.gmra.mrb[0].mxu0 %v691
  %v950 = vpop.f32.mrb[0].mxu0
  %v951 = vadd.f32 %v717, %v950
  %v952 = vpop.f32.mrb[0].mxu0
  %953 = vmatprep.mubr.f32.mxu0 0.0
  %954 = vmatmul.mubr.f32.gmra.mrb[0].mxu0 %v692
  %v955 = vpop.f32.mrb[0].mxu0
  %v956 = vadd.f32 %v717, %v955
  %v957 = vpop.f32.mrb[0].mxu0
  %958 = vmatprep.mubr.f32.mxu0 0.0
  %959 = vmatmul.mubr.f32.gmra.mrb[0].mxu0 %v693
  %v960 = vpop.f32.mrb[0].mxu0
  %v961 = vadd.f32 %v717, %v960
  %v962 = vpop.f32.mrb[0].mxu0
  %963 = vmatprep.mubr.f32.mxu0 0.0
  %964 = vmatmul.mubr.f32.gmra.mrb[0].mxu0 %v694
  %v965 = vpop.f32.mrb[0].mxu0
  %v966 = vadd.f32 %v717, %v965
  %v967 = vpop.f32.mrb[0].mxu0
  %968 = vmatprep.mubr.f32.mxu0 0.0
  %969 = vmatmul.mubr.f32.gmra.mrb[0].mxu0 %v695
  %v970 = vpop.f32.mrb[0].mxu0
  %v971 = vadd.f32 %v717, %v970
  %v972 = vpop.f32.mrb[0].mxu0
  %973 = vdwg.mxu0
  %974 = vst [vmem:[%s7] sm:$0xff] %v786
  %975 = vst [vmem:[%s7 + $0x8] sm:$0xff] %v791
  %976 = vst [vmem:[%s7 + $0x10] sm:$0xff] %v796
  %977 = vst [vmem:[%s7 + $0x18] sm:$0xff] %v801
  %978 = vst [vmem:[%s7 + $0x20] sm:$0xff] %v806
  %979 = vst [vmem:[%s7 + $0x28] sm:$0xff] %v811
  %980 = vst [vmem:[%s7 + $0x30] sm:$0xff] %v816
  %981 = vst [vmem:[%s7 + $0x38] sm:$0xff] %v821
  %982 = vst [vmem:[%s7 + $0x40] sm:$0xff] %v826
  %983 = vst [vmem:[%s7 + $0x48] sm:$0xff] %v831
  %984 = vst [vmem:[%s7 + $0x50] sm:$0xff] %v836
  %985 = vst [vmem:[%s7 + $0x58] sm:$0xff] %v841
  %986 = vst [vmem:[%s7 + $0x60] sm:$0xff] %v846
  %987 = vst [vmem:[%s7 + $0x68] sm:$0xff] %v851
  %988 = vst [vmem:[%s7 + $0x70] sm:$0xff] %v856
  %989 = vst [vmem:[%s7 + $0x78] sm:$0xff] %v861
  %990 = vst [vmem:[%s7 + $0x80] sm:$0xff] %v866
  %991 = vst [vmem:[%s7 + $0x88] sm:$0xff] %v871
  %992 = vst [vmem:[%s7 + $0x90] sm:$0xff] %v876
  %993 = vst [vmem:[%s7 + $0x98] sm:$0xff] %v881
  %994 = vst [vmem:[%s7 + $0xa0] sm:$0xff] %v886
  %995 = vst [vmem:[%s7 + $0xa8] sm:$0xff] %v891
  %996 = vst [vmem:[%s7 + $0xb0] sm:$0xff] %v896
  %997 = vst [vmem:[%s7 + $0xb8] sm:$0xff] %v901
  %998 = vst [vmem:[%s7 + $0xc0] sm:$0xff] %v906
  %999 = vst [vmem:[%s7 + $0xc8] sm:$0xff] %v911
  %1000 = vst [vmem:[%s7 + $0xd0] sm:$0xff] %v916
  %1001 = vst [vmem:[%s7 + $0xd8] sm:$0xff] %v921
  %1002 = vst [vmem:[%s7 + $0xe0] sm:$0xff] %v926
  %1003 = vst [vmem:[%s7 + $0xe8] sm:$0xff] %v931
  %1004 = vst [vmem:[%s7 + $0xf0] sm:$0xff] %v936
  %1005 = vst [vmem:[%s7 + $0xf8] sm:$0xff] %v941
  %1006 = vst [vmem:[%s7 + $0x100] sm:$0xff] %v946
  %1007 = vst [vmem:[%s7 + $0x108] sm:$0xff] %v951
  %1008 = vst [vmem:[%s7 + $0x110] sm:$0xff] %v956
  %1009 = vst [vmem:[%s7 + $0x118] sm:$0xff] %v961
  %1010 = vst [vmem:[%s7 + $0x120] sm:$0xff] %v966
  %1011 = vst [vmem:[%s7 + $0x128] sm:$0xff] %v971
  // Predicated region
  $region30: #{_mlp_forward_impl.1} parent=0 // pred_check
    _
  $region31: #{_mlp_forward_impl.1} parent=0 // pred_check_branch
    %1013 = sbr.rel (0) target = $region33
  $region32: #{_mlp_forward_impl.1} parent=0 // pred_region
    _
  $region33: #{_mlp_forward_impl.1} parent=0 // pred_fallthru
    _
  // Predicated region
  $region34: #{_mlp_forward_impl.1} parent=0 // pred_check
    _
  $region35: #{_mlp_forward_impl.1} parent=0 // pred_check_branch
    %1015 = sbr.rel (0) target = $region37
  $region36: #{_mlp_forward_impl.1} parent=0 // pred_region
    _
  $region37: #{_mlp_forward_impl.1} parent=0 // pred_fallthru
    _

</llo_original>
